<compile_context>
chip_gen: v7x
topology: tpu7x:2x2x1
jax: 0.10.0
libtpu: 0.0.40
codegen_flags: <defaults>
</compile_context>

<pallas_src>
import functools

import jax
import jax.numpy as jnp
from jax import lax
from jax.experimental import pallas as pl
from jax.experimental.pallas import tpu as pltpu


def _round_up(x, m):
    return (x + m - 1) // m * m


def _pad2(a, rows, cols, dtype):
    r, c = a.shape
    return jnp.pad(a, ((0, rows - r), (0, cols - c))).astype(dtype)


def _vmem_capacity_bytes():
    """Per-core VMEM capacity; falls back to 128 MiB if the query fails."""
    try:
        return int(pltpu.get_tpu_info().vmem_capacity_bytes)
    except Exception:
        return 128 << 20


def rcnn_head_softmax_kernel(x_ref, w1_ref, b1_ref, w2_ref, b2_ref, out_ref,
                             acc_ref, *, num_fg):
    """One (ROI tile, K chunk) step of softmax(relu(x@W1+b1) @ W2_fg + b2_fg)."""
    k = pl.program_id(1)

    # f32 accumulator over the K (input-feature) reduction axis.
    @pl.when(k == 0)
    def _():
        acc_ref[...] = jnp.zeros_like(acc_ref)

    # (tile_n, tk) @ (tk, h_pad) on the MXU: bf16 inputs, f32 accumulation.
    acc_ref[...] += jnp.dot(x_ref[...].astype(jnp.bfloat16), w1_ref[...],
                            preferred_element_type=jnp.float32)

    # Epilogue only on the last K chunk: bias + relu, class matmul, softmax.
    @pl.when(k == pl.num_programs(1) - 1)
    def _():
        h = jnp.maximum(acc_ref[...] + b1_ref[...], 0.0)
        logits = jnp.dot(h.astype(jnp.bfloat16), w2_ref[...],
                         preferred_element_type=jnp.float32) + b2_ref[...]
        # Background column was dropped in the wrapper; only mask lane padding.
        col = lax.broadcasted_iota(jnp.int32, logits.shape, 1)
        masked = jnp.where(col >= num_fg, -jnp.inf, logits)
        m = jnp.max(masked, axis=-1, keepdims=True)
        e = jnp.exp(masked - m)
        s = jnp.sum(e, axis=-1, keepdims=True)
        # Exact reciprocal keeps the tight row-sum / reference tolerance.
        out_ref[...] = (e * pl.reciprocal(s, approx=False)).astype(out_ref.dtype)


def wrap_model_forward(x, params, *, tile_n=None, max_tk=2048):
    """Pallas implementation of WrapModel.forward(x) = softmax(head(x)[..., 1:])."""
    w1, b1, w2, b2 = params
    n, d = x.shape
    hidden = w1.shape[1]
    num_classes = w2.shape[1]
    if num_classes < 2:
        raise ValueError("WrapModel needs num_classes >= 2 (background + foreground).")
    num_fg = num_classes - 1

    # Chip-dependent VMEM strategy: <=64 MiB/TC (v7x-like) -> stream W1 over a
    # K grid axis, smaller tiles, headroom-capped limit; 128 MiB (v5e/v6e) ->
    # W1 fully resident, big tiles, raised limit.
    vmem_capacity = _vmem_capacity_bytes()
    small_vmem = vmem_capacity <= (64 << 20)

    # Lane-dense (multiple-of-128) padding of every minor dim.
    h_pad = _round_up(hidden, 128)
    c_pad = _round_up(num_fg, 128)
    d_pad = _round_up(d, 128)
    if small_vmem and d_pad > max_tk:
        k_tiles = pl.cdiv(d_pad, max_tk)
        tk = _round_up(pl.cdiv(d_pad, k_tiles), 128)
        d_pad = tk * k_tiles
    else:
        tk = d_pad
        k_tiles = 1

    # ROI tiling: multiples of 16 rows (bf16-sublane friendly).
    if tile_n is None:
        tile_n = 256 if small_vmem else 512
    n_ceil = _round_up(n, 16)
    tile_n = min(tile_n, n_ceil)
    if small_vmem and n_ceil > tile_n and (n_ceil // tile_n) < 2:
        tile_n = _round_up(-(-n_ceil // 2), 16)   # >=2 ROI tiles for 2 TCs
    n_pad = _round_up(n, tile_n)
    n_tiles = n_pad // tile_n

    # Drop the background class (column 0) BEFORE the kernel: the final output
    # slice then starts at lane 0 and the epilogue needs no background mask.
    w2_fg = w2[:, 1:]
    b2_fg = b2[:, 1:]

    # Weights bf16 (MXU-native); biases + softmax epilogue stay f32.
    w1_p = _pad2(w1, d_pad, h_pad, jnp.bfloat16)
    b1_p = _pad2(b1, 1, h_pad, jnp.float32)
    w2_p = _pad2(w2_fg, h_pad, c_pad, jnp.bfloat16)
    b2_p = _pad2(b2_fg, 1, c_pad, jnp.float32)

    # x: skip the wrapper-side pad/cast pass when no padding is needed and VMEM
    # is plentiful (cast to bf16 inside the kernel instead); otherwise store
    # bf16 in HBM to halve tile traffic.
    if (n == n_pad) and (d == d_pad) and not small_vmem:
        x_in = x
    else:
        x_in = _pad2(x, n_pad, d_pad, jnp.bfloat16)
    x_itemsize = jnp.dtype(x_in.dtype).itemsize

    # VMEM estimate: single-buffered residents, double-buffered streamed tiles.
    w1_bufs = 1 if k_tiles == 1 else 2
    vmem_bytes = (2 * tile_n * tk * x_itemsize          # x tiles (x2 buffers)
                  + w1_bufs * tk * h_pad * 2            # W1 chunk(s)
                  + h_pad * 4 + c_pad * 4               # b1, b2 (f32)
                  + h_pad * c_pad * 2                   # W2 (resident)
                  + 2 * tile_n * c_pad * 4              # out tiles (x2 buffers)
                  + tile_n * h_pad * 4                  # f32 accumulator
                  + (4 << 20))                          # compiler scratch slack
    vmem_cap = (48 << 20) if small_vmem else min(100 << 20,
                                                 vmem_capacity - (16 << 20))
    vmem_limit = int(min(max(vmem_bytes, 32 << 20), vmem_cap))

    cost = pl.CostEstimate(
        flops=2 * n_pad * (d_pad * h_pad + h_pad * c_pad),
        transcendentals=n_pad * c_pad,
        bytes_accessed=(x_in.size * x_itemsize
                        + n_tiles * w1_p.size * 2       # W1 re-streamed per ROI tile
                        + w2_p.size * 2 + b1_p.size * 4 + b2_p.size * 4
                        + n_pad * c_pad * 4),
    )

    kernel = functools.partial(rcnn_head_softmax_kernel, num_fg=num_fg)
    out_shape = jax.ShapeDtypeStruct((n_pad, c_pad), jnp.float32)

    def build(single_buffer_residents):
        def const_spec(shape):
            if single_buffer_residents:
                return pl.BlockSpec(shape, lambda i, k: (0, 0),
                                    pipeline_mode=pl.Buffered(1))
            return pl.BlockSpec(shape, lambda i, k: (0, 0))

        w1_spec = (const_spec((tk, h_pad)) if k_tiles == 1
                   else pl.BlockSpec((tk, h_pad), lambda i, k: (k, 0)))
        return pl.pallas_call(
            kernel,
            out_shape=out_shape,
            grid=(n_tiles, k_tiles),                      # K (reduction) last
            in_specs=[
                pl.BlockSpec((tile_n, tk), lambda i, k: (i, k)),   # x tiles
                w1_spec,                                           # W1
                const_spec((1, h_pad)),                            # b1 resident
                const_spec((h_pad, c_pad)),                        # W2 resident
                const_spec((1, c_pad)),                            # b2 resident
            ],
            out_specs=pl.BlockSpec((tile_n, c_pad), lambda i, k: (i, 0)),
            scratch_shapes=[pltpu.VMEM((tile_n, h_pad), jnp.float32)],
            compiler_params=pltpu.CompilerParams(
                dimension_semantics=("parallel", "arbitrary"),
                vmem_limit_bytes=vmem_limit,
            ),
            cost_estimate=cost,
        )

    try:
        probs_full = build(True)(x_in, w1_p, b1_p, w2_p, b2_p)
    except Exception:
        # Fallback for JAX versions where pipeline_mode=pl.Buffered(1) on
        # constant-index-map operands is not accepted.
        probs_full = build(False)(x_in, w1_p, b1_p, w2_p, b2_p)

    # Glue: drop padded ROI rows and padded class lanes (background already
    # removed before the kernel, so this slice is lane-0-aligned).
    return probs_full[:n, :num_fg]


def make_params(key, in_features, hidden, num_classes):
    k1, k2, k3, k4 = jax.random.split(key, 4)
    w1 = jax.random.normal(k1, (in_features, hidden), jnp.float32) * 0.05
    b1 = jax.random.normal(k2, (1, hidden), jnp.float32) * 0.01
    w2 = jax.random.normal(k3, (hidden, num_classes), jnp.float32) * 0.05
    b2 = jax.random.normal(k4, (1, num_classes), jnp.float32) * 0.01
    return w1, b1, w2, b2


def reference_forward(x, params):
    """Pure-JAX reference with the same bf16-matmul / f32-softmax recipe."""
    w1, b1, w2, b2 = params
    h = jnp.dot(x.astype(jnp.bfloat16), w1.astype(jnp.bfloat16),
                preferred_element_type=jnp.float32) + b1
    h = jnp.maximum(h, 0.0)
    logits = jnp.dot(h.astype(jnp.bfloat16), w2.astype(jnp.bfloat16),
                     preferred_element_type=jnp.float32) + b2
    return jax.nn.softmax(logits[..., 1:], axis=-1)


if __name__ == "__main__":
    # Small, module-consistent shapes: 8 ROIs, 32 input features,
    # 64 hidden units, 16 classes (class 0 = background).
    N, D_IN, HIDDEN, NUM_CLASSES = 8, 32, 64, 16

    key = jax.random.PRNGKey(0)
    kx, kp = jax.random.split(key)
    x = jax.random.normal(kx, (N, D_IN), jnp.float32)
    params = make_params(kp, D_IN, HIDDEN, NUM_CLASSES)

    out = wrap_model_forward(x, params)
    out = jax.block_until_ready(out)

    ref = reference_forward(x, params)
    assert out.shape == (N, NUM_CLASSES - 1), out.shape
    assert jnp.allclose(out, ref, atol=2e-3, rtol=2e-3), "mismatch vs reference"
    # Rows must sum to 1 (softmax over the non-background classes only).
    assert jnp.allclose(out.sum(-1), 1.0, atol=1e-4), "rows not normalized"

    print("KERNEL_OK")
</pallas_src>

<mosaic_0001>
module attributes {stable_mosaic.version = 11 : i64} {
  func.func @rcnn_head_softmax_kernel(%arg0: i32, %arg1: i32, %arg2: memref<16x128xbf16, #tpu.memory_space<vmem>>, %arg3: memref<128x128xbf16, #tpu.memory_space<vmem>>, %arg4: memref<1x128xf32, #tpu.memory_space<vmem>>, %arg5: memref<128x128xbf16, #tpu.memory_space<vmem>>, %arg6: memref<1x128xf32, #tpu.memory_space<vmem>>, %arg7: memref<16x128xf32, #tpu.memory_space<vmem>>, %arg8: memref<16x128xf32, #tpu.memory_space<vmem>>) attributes {dimension_semantics = [#tpu.dimension_semantics<parallel>, #tpu.dimension_semantics<arbitrary>], iteration_bounds = array<i64: 1, 1>, scalar_prefetch = 0 : i64, scratch_operands = 1 : i64, tpu.core_type = #tpu.core_type<tc>, window_params = [{transform_indices = @transform_0, window_bounds = array<i64: 16, 128>}, {pipeline_mode = #tpu.pipeline_mode<synchronous>, transform_indices = @transform_1, window_bounds = array<i64: 128, 128>}, {pipeline_mode = #tpu.pipeline_mode<synchronous>, transform_indices = @transform_2, window_bounds = array<i64: 1, 128>}, {pipeline_mode = #tpu.pipeline_mode<synchronous>, transform_indices = @transform_3, window_bounds = array<i64: 128, 128>}, {pipeline_mode = #tpu.pipeline_mode<synchronous>, transform_indices = @transform_4, window_bounds = array<i64: 1, 128>}, {transform_indices = @transform_5, window_bounds = array<i64: 16, 128>}]} {
    %c0_i32 = arith.constant 0 : i32
    %0 = arith.cmpi eq, %arg1, %c0_i32 : i32
    %1 = arith.extui %0 : i1 to i32
    %c0_i32_0 = arith.constant 0 : i32
    %2 = arith.cmpi ne, %1, %c0_i32_0 : i32
    scf.if %2 {
      %cst_10 = arith.constant 0.000000e+00 : f32
      %12 = vector.broadcast %cst_10 : f32 to vector<16x128xf32>
      %c0_11 = arith.constant 0 : index
      %c0_12 = arith.constant 0 : index
      %13 = vector.load %arg8[%c0_11, %c0_12] : memref<16x128xf32, #tpu.memory_space<vmem>>, vector<16x128xf32>
      tpu.vector_store %arg8[%c0_11, %c0_12], %12 {strides = array<i32>} : memref<16x128xf32, #tpu.memory_space<vmem>>, vector<16x128xf32>,
    } else {
    }
    %c0 = arith.constant 0 : index
    %c0_1 = arith.constant 0 : index
    %3 = vector.load %arg8[%c0, %c0_1] : memref<16x128xf32, #tpu.memory_space<vmem>>, vector<16x128xf32>
    %c0_2 = arith.constant 0 : index
    %c0_3 = arith.constant 0 : index
    %4 = vector.load %arg2[%c0_2, %c0_3] : memref<16x128xbf16, #tpu.memory_space<vmem>>, vector<16x128xbf16>
    %c0_4 = arith.constant 0 : index
    %c0_5 = arith.constant 0 : index
    %5 = vector.load %arg3[%c0_4, %c0_5] : memref<128x128xbf16, #tpu.memory_space<vmem>>, vector<128x128xbf16>
    %cst = arith.constant dense<0.000000e+00> : vector<16x128xf32>
    %6 = tpu.matmul %4, %5, %cst {dimension_numbers = #tpu.dot_dimension_numbers<[1], [0], [0], [1], [0, 0, 1, 1], [], []>} : vector<16x128xbf16>, vector<128x128xbf16>, vector<16x128xf32> -> vector<16x128xf32>
    %7 = arith.addf %3, %6 : vector<16x128xf32>
    %c0_6 = arith.constant 0 : index
    %c0_7 = arith.constant 0 : index
    %8 = vector.load %arg8[%c0_6, %c0_7] : memref<16x128xf32, #tpu.memory_space<vmem>>, vector<16x128xf32>
    tpu.vector_store %arg8[%c0_6, %c0_7], %7 {strides = array<i32>} : memref<16x128xf32, #tpu.memory_space<vmem>>, vector<16x128xf32>,
    %c0_i32_8 = arith.constant 0 : i32
    %9 = arith.cmpi eq, %arg1, %c0_i32_8 : i32
    %10 = arith.extui %9 : i1 to i32
    %c0_i32_9 = arith.constant 0 : i32
    %11 = arith.cmpi ne, %10, %c0_i32_9 : i32
    scf.if %11 {
      %c0_10 = arith.constant 0 : index
      %c0_11 = arith.constant 0 : index
      %12 = vector.load %arg8[%c0_10, %c0_11] : memref<16x128xf32, #tpu.memory_space<vmem>>, vector<16x128xf32>
      %c0_12 = arith.constant 0 : index
      %c0_13 = arith.constant 0 : index
      %13 = vector.load %arg4[%c0_12, %c0_13] : memref<1x128xf32, #tpu.memory_space<vmem>>, vector<1x128xf32>
      %14 = vector.broadcast %13 : vector<1x128xf32> to vector<16x128xf32>
      %15 = arith.addf %12, %14 : vector<16x128xf32>
      %cst_14 = arith.constant 0.000000e+00 : f32
      %16 = vector.broadcast %cst_14 : f32 to vector<16x128xf32>
      %17 = arith.maximumf %15, %16 : vector<16x128xf32>
      %18 = arith.truncf %17 : vector<16x128xf32> to vector<16x128xbf16>
      %c0_15 = arith.constant 0 : index
      %c0_16 = arith.constant 0 : index
      %19 = vector.load %arg5[%c0_15, %c0_16] : memref<128x128xbf16, #tpu.memory_space<vmem>>, vector<128x128xbf16>
      %cst_17 = arith.constant dense<0.000000e+00> : vector<16x128xf32>
      %20 = tpu.matmul %18, %19, %cst_17 {dimension_numbers = #tpu.dot_dimension_numbers<[1], [0], [0], [1], [0, 0, 1, 1], [], []>} : vector<16x128xbf16>, vector<128x128xbf16>, vector<16x128xf32> -> vector<16x128xf32>
      %c0_18 = arith.constant 0 : index
      %c0_19 = arith.constant 0 : index
      %21 = vector.load %arg6[%c0_18, %c0_19] : memref<1x128xf32, #tpu.memory_space<vmem>>, vector<1x128xf32>
      %22 = vector.broadcast %21 : vector<1x128xf32> to vector<16x128xf32>
      %23 = arith.addf %20, %22 : vector<16x128xf32>
      %24 = tpu.iota {dimensions = array<i32: 1>} : vector<16x128xi32>
      %c15_i32 = arith.constant 15 : i32
      %25 = vector.broadcast %c15_i32 : i32 to vector<16x128xi32>
      %26 = arith.cmpi sge, %24, %25 : vector<16x128xi32>
      %cst_20 = arith.constant 0xFF800000 : f32
      %27 = vector.broadcast %cst_20 : f32 to vector<16x128xf32>
      %28 = arith.select %26, %27, %23 : vector<16x128xi1>, vector<16x128xf32>
      %cst_21 = arith.constant dense<0xFF800000> : vector<16xf32>
      %29 = vector.multi_reduction <maximumf>, %28, %cst_21 [1] : vector<16x128xf32> to vector<16xf32>
      %30 = vector.shape_cast %29 : vector<16xf32> to vector<16x1xf32>
      %31 = vector.broadcast %30 : vector<16x1xf32> to vector<16x128xf32>
      %32 = arith.subf %28, %31 : vector<16x128xf32>
      %33 = math.exp %32 : vector<16x128xf32>
      %cst_22 = arith.constant dense<0.000000e+00> : vector<16xf32>
      %34 = vector.multi_reduction <add>, %33, %cst_22 [1] : vector<16x128xf32> to vector<16xf32>
      %35 = vector.shape_cast %34 : vector<16xf32> to vector<16x1xf32>
      %36 = tpu.reciprocal %35 : vector<16x1xf32> -> vector<16x1xf32>
      %37 = vector.broadcast %36 : vector<16x1xf32> to vector<16x128xf32>
      %38 = arith.mulf %33, %37 : vector<16x128xf32>
      %c0_23 = arith.constant 0 : index
      %c0_24 = arith.constant 0 : index
      %39 = vector.load %arg7[%c0_23, %c0_24] : memref<16x128xf32, #tpu.memory_space<vmem>>, vector<16x128xf32>
      tpu.vector_store %arg7[%c0_23, %c0_24], %38 {strides = array<i32>} : memref<16x128xf32, #tpu.memory_space<vmem>>, vector<16x128xf32>,
    } else {
    }
    return
  }
  func.func @transform_0(%arg0: i32, %arg1: i32) -> (i32, i32) {
    %c0_i32 = arith.constant 0 : i32
    return %arg0, %arg1 : i32, i32
  }
  func.func @transform_1(%arg0: i32, %arg1: i32) -> (i32, i32) {
    %c0_i32 = arith.constant 0 : i32
    %c0_i32_0 = arith.constant 0 : i32
    %c0_i32_1 = arith.constant 0 : i32
    return %c0_i32, %c0_i32_0 : i32, i32
  }
  func.func @transform_2(%arg0: i32, %arg1: i32) -> (i32, i32) {
    %c0_i32 = arith.constant 0 : i32
    %c0_i32_0 = arith.constant 0 : i32
    %c0_i32_1 = arith.constant 0 : i32
    return %c0_i32, %c0_i32_0 : i32, i32
  }
  func.func @transform_3(%arg0: i32, %arg1: i32) -> (i32, i32) {
    %c0_i32 = arith.constant 0 : i32
    %c0_i32_0 = arith.constant 0 : i32
    %c0_i32_1 = arith.constant 0 : i32
    return %c0_i32, %c0_i32_0 : i32, i32
  }
  func.func @transform_4(%arg0: i32, %arg1: i32) -> (i32, i32) {
    %c0_i32 = arith.constant 0 : i32
    %c0_i32_0 = arith.constant 0 : i32
    %c0_i32_1 = arith.constant 0 : i32
    return %c0_i32, %c0_i32_0 : i32, i32
  }
  func.func @transform_5(%arg0: i32, %arg1: i32) -> (i32, i32) {
    %c0_i32 = arith.constant 0 : i32
    %c0_i32_0 = arith.constant 0 : i32
    return %arg0, %c0_i32 : i32, i32
  }
}

module attributes {stable_mosaic.version = 11 : i64} {
  func.func @rcnn_head_softmax_kernel(%arg0: i32, %arg1: i32, %arg2: memref<16x128xbf16, #tpu.memory_space<vmem>>, %arg3: memref<128x128xbf16, #tpu.memory_space<vmem>>, %arg4: memref<1x128xf32, #tpu.memory_space<vmem>>, %arg5: memref<128x128xbf16, #tpu.memory_space<vmem>>, %arg6: memref<1x128xf32, #tpu.memory_space<vmem>>, %arg7: memref<16x128xf32, #tpu.memory_space<vmem>>, %arg8: memref<16x128xf32, #tpu.memory_space<vmem>>) attributes {dimension_semantics = [#tpu.dimension_semantics<parallel>, #tpu.dimension_semantics<arbitrary>], iteration_bounds = array<i64: 1, 1>, scalar_prefetch = 0 : i64, scratch_operands = 1 : i64, tpu.core_type = #tpu.core_type<tc>, window_params = [{transform_indices = @transform_0, window_bounds = array<i64: 16, 128>}, {pipeline_mode = #tpu.pipeline_mode<synchronous>, transform_indices = @transform_1, window_bounds = array<i64: 128, 128>}, {pipeline_mode = #tpu.pipeline_mode<synchronous>, transform_indices = @transform_2, window_bounds = array<i64: 1, 128>}, {pipeline_mode = #tpu.pipeline_mode<synchronous>, transform_indices = @transform_3, window_bounds = array<i64: 128, 128>}, {pipeline_mode = #tpu.pipeline_mode<synchronous>, transform_indices = @transform_4, window_bounds = array<i64: 1, 128>}, {transform_indices = @transform_5, window_bounds = array<i64: 16, 128>}]} {
    %c0_i32 = arith.constant 0 : i32
    %0 = arith.cmpi eq, %arg1, %c0_i32 : i32
    %1 = arith.extui %0 : i1 to i32
    %c0_i32_0 = arith.constant 0 : i32
    %2 = arith.cmpi ne, %1, %c0_i32_0 : i32
    scf.if %2 {
      %cst_10 = arith.constant 0.000000e+00 : f32
      %12 = vector.broadcast %cst_10 : f32 to vector<16x128xf32>
      %c0_11 = arith.constant 0 : index
      %c0_12 = arith.constant 0 : index
      %13 = vector.load %arg8[%c0_11, %c0_12] : memref<16x128xf32, #tpu.memory_space<vmem>>, vector<16x128xf32>
      tpu.vector_store %arg8[%c0_11, %c0_12], %12 {strides = array<i32>} : memref<16x128xf32, #tpu.memory_space<vmem>>, vector<16x128xf32>,
    } else {
    }
    %c0 = arith.constant 0 : index
    %c0_1 = arith.constant 0 : index
    %3 = vector.load %arg8[%c0, %c0_1] : memref<16x128xf32, #tpu.memory_space<vmem>>, vector<16x128xf32>
    %c0_2 = arith.constant 0 : index
    %c0_3 = arith.constant 0 : index
    %4 = vector.load %arg2[%c0_2, %c0_3] : memref<16x128xbf16, #tpu.memory_space<vmem>>, vector<16x128xbf16>
    %c0_4 = arith.constant 0 : index
    %c0_5 = arith.constant 0 : index
    %5 = vector.load %arg3[%c0_4, %c0_5] : memref<128x128xbf16, #tpu.memory_space<vmem>>, vector<128x128xbf16>
    %cst = arith.constant dense<0.000000e+00> : vector<16x128xf32>
    %6 = tpu.matmul %4, %5, %cst {dimension_numbers = #tpu.dot_dimension_numbers<[1], [0], [0], [1], [0, 0, 1, 1], [], []>} : vector<16x128xbf16>, vector<128x128xbf16>, vector<16x128xf32> -> vector<16x128xf32>
    %7 = arith.addf %3, %6 : vector<16x128xf32>
    %c0_6 = arith.constant 0 : index
    %c0_7 = arith.constant 0 : index
    %8 = vector.load %arg8[%c0_6, %c0_7] : memref<16x128xf32, #tpu.memory_space<vmem>>, vector<16x128xf32>
    tpu.vector_store %arg8[%c0_6, %c0_7], %7 {strides = array<i32>} : memref<16x128xf32, #tpu.memory_space<vmem>>, vector<16x128xf32>,
    %c0_i32_8 = arith.constant 0 : i32
    %9 = arith.cmpi eq, %arg1, %c0_i32_8 : i32
    %10 = arith.extui %9 : i1 to i32
    %c0_i32_9 = arith.constant 0 : i32
    %11 = arith.cmpi ne, %10, %c0_i32_9 : i32
    scf.if %11 {
      %c0_10 = arith.constant 0 : index
      %c0_11 = arith.constant 0 : index
      %12 = vector.load %arg8[%c0_10, %c0_11] : memref<16x128xf32, #tpu.memory_space<vmem>>, vector<16x128xf32>
      %c0_12 = arith.constant 0 : index
      %c0_13 = arith.constant 0 : index
      %13 = vector.load %arg4[%c0_12, %c0_13] : memref<1x128xf32, #tpu.memory_space<vmem>>, vector<1x128xf32>
      %14 = vector.broadcast %13 : vector<1x128xf32> to vector<16x128xf32>
      %15 = arith.addf %12, %14 : vector<16x128xf32>
      %cst_14 = arith.constant 0.000000e+00 : f32
      %16 = vector.broadcast %cst_14 : f32 to vector<16x128xf32>
      %17 = arith.maximumf %15, %16 : vector<16x128xf32>
      %18 = arith.truncf %17 : vector<16x128xf32> to vector<16x128xbf16>
      %c0_15 = arith.constant 0 : index
      %c0_16 = arith.constant 0 : index
      %19 = vector.load %arg5[%c0_15, %c0_16] : memref<128x128xbf16, #tpu.memory_space<vmem>>, vector<128x128xbf16>
      %cst_17 = arith.constant dense<0.000000e+00> : vector<16x128xf32>
      %20 = tpu.matmul %18, %19, %cst_17 {dimension_numbers = #tpu.dot_dimension_numbers<[1], [0], [0], [1], [0, 0, 1, 1], [], []>} : vector<16x128xbf16>, vector<128x128xbf16>, vector<16x128xf32> -> vector<16x128xf32>
      %c0_18 = arith.constant 0 : index
      %c0_19 = arith.constant 0 : index
      %21 = vector.load %arg6[%c0_18, %c0_19] : memref<1x128xf32, #tpu.memory_space<vmem>>, vector<1x128xf32>
      %22 = vector.broadcast %21 : vector<1x128xf32> to vector<16x128xf32>
      %23 = arith.addf %20, %22 : vector<16x128xf32>
      %24 = tpu.iota {dimensions = array<i32: 1>} : vector<16x128xi32>
      %c15_i32 = arith.constant 15 : i32
      %25 = vector.broadcast %c15_i32 : i32 to vector<16x128xi32>
      %26 = arith.cmpi sge, %24, %25 : vector<16x128xi32>
      %cst_20 = arith.constant 0xFF800000 : f32
      %27 = vector.broadcast %cst_20 : f32 to vector<16x128xf32>
      %28 = arith.select %26, %27, %23 : vector<16x128xi1>, vector<16x128xf32>
      %cst_21 = arith.constant dense<0xFF800000> : vector<16xf32>
      %29 = vector.multi_reduction <maximumf>, %28, %cst_21 [1] : vector<16x128xf32> to vector<16xf32>
      %30 = vector.shape_cast %29 : vector<16xf32> to vector<16x1xf32>
      %31 = vector.broadcast %30 : vector<16x1xf32> to vector<16x128xf32>
      %32 = arith.subf %28, %31 : vector<16x128xf32>
      %33 = math.exp %32 : vector<16x128xf32>
      %cst_22 = arith.constant dense<0.000000e+00> : vector<16xf32>
      %34 = vector.multi_reduction <add>, %33, %cst_22 [1] : vector<16x128xf32> to vector<16xf32>
      %35 = vector.shape_cast %34 : vector<16xf32> to vector<16x1xf32>
      %36 = tpu.reciprocal %35 : vector<16x1xf32> -> vector<16x1xf32>
      %37 = vector.broadcast %36 : vector<16x1xf32> to vector<16x128xf32>
      %38 = arith.mulf %33, %37 : vector<16x128xf32>
      %c0_23 = arith.constant 0 : index
      %c0_24 = arith.constant 0 : index
      %39 = vector.load %arg7[%c0_23, %c0_24] : memref<16x128xf32, #tpu.memory_space<vmem>>, vector<16x128xf32>
      tpu.vector_store %arg7[%c0_23, %c0_24], %38 {strides = array<i32>} : memref<16x128xf32, #tpu.memory_space<vmem>>, vector<16x128xf32>,
    } else {
    }
    return
  }
  func.func @transform_0(%arg0: i32, %arg1: i32) -> (i32, i32) {
    %c0_i32 = arith.constant 0 : i32
    return %arg0, %arg1 : i32, i32
  }
  func.func @transform_1(%arg0: i32, %arg1: i32) -> (i32, i32) {
    %c0_i32 = arith.constant 0 : i32
    %c0_i32_0 = arith.constant 0 : i32
    %c0_i32_1 = arith.constant 0 : i32
    return %c0_i32, %c0_i32_0 : i32, i32
  }
  func.func @transform_2(%arg0: i32, %arg1: i32) -> (i32, i32) {
    %c0_i32 = arith.constant 0 : i32
    %c0_i32_0 = arith.constant 0 : i32
    %c0_i32_1 = arith.constant 0 : i32
    return %c0_i32, %c0_i32_0 : i32, i32
  }
  func.func @transform_3(%arg0: i32, %arg1: i32) -> (i32, i32) {
    %c0_i32 = arith.constant 0 : i32
    %c0_i32_0 = arith.constant 0 : i32
    %c0_i32_1 = arith.constant 0 : i32
    return %c0_i32, %c0_i32_0 : i32, i32
  }
  func.func @transform_4(%arg0: i32, %arg1: i32) -> (i32, i32) {
    %c0_i32 = arith.constant 0 : i32
    %c0_i32_0 = arith.constant 0 : i32
    %c0_i32_1 = arith.constant 0 : i32
    return %c0_i32, %c0_i32_0 : i32, i32
  }
  func.func @transform_5(%arg0: i32, %arg1: i32) -> (i32, i32) {
    %c0_i32 = arith.constant 0 : i32
    %c0_i32_0 = arith.constant 0 : i32
    return %arg0, %c0_i32 : i32, i32
  }
}

</mosaic_0001>

<llo_original>
// kernel: tpu_custom_call.1
$region0: #{tpu_custom_call.1}
  #allocation0 [shape = 'u32[]', space=smem, size = 0x4, offset = 0x4, fixed_abs, tag = 'smem constant byte address 0x4 - core index']
  #allocation1 [shape = 'u32[144,128]{1,0:T(1,128)}', space=vmem, size = 0x12000, scoped, tag = 'internal scratch']
  #allocation2 [shape = 'f32[16,128]{1,0:T(8,128)}', space=vmem, size = 0x2000, scoped, tag = 'scratch operand']
  %s0 = inlined_call_operand.hbm [shape: bf16[16,128], index: 0, kind: input, shape index: {}]
  %s1 = inlined_call_operand.hbm [shape: bf16[128,128], index: 1, kind: input, shape index: {}]
  %s2 = inlined_call_operand.vmem [shape: f32[1,128], index: 2, kind: input, shape index: {}]
  %s3 = inlined_call_operand.hbm [shape: bf16[128,128], index: 3, kind: input, shape index: {}]
  %s4 = inlined_call_operand.vmem [shape: f32[1,128], index: 4, kind: input, shape index: {}]
  %s5 = inlined_call_operand.hbm [shape: f32[16,128], index: 5, kind: output, shape index: {}]
  %s6 = sld [smem:[#allocation0]]
  $region50: #{tpu_custom_call.1} parent=0
    _
  %s8 = ssub.s32 1, %s6
  %s9 = scalar_select 0, %s8, %s6
  $region1: #{tpu_custom_call.1} parent=0
    #allocation3 [shape = 'u8[4096]{0}', space=vmem, size = 0x1000, scoped, tag = 'input window, operand 0, single buffered']
    #allocation4 [shape = 's32[1]{0}', space=sflag, size = 0x4, scoped, tag = 'scoped memory for tpu_custom_call.1']
    #allocation5 [shape = 's32[1]{0}', space=sflag, size = 0x4, scoped, tag = 'scoped memory for tpu_custom_call.1']
    #allocation6 [shape = 'u8[32768]{0}', space=vmem, size = 0x8000, scoped, tag = 'input window, operand 1, single buffered']
    #allocation7 [shape = 's32[1]{0}', space=sflag, size = 0x4, scoped, tag = 'scoped memory for tpu_custom_call.1']
    #allocation8 [shape = 'u8[32768]{0}', space=vmem, size = 0x8000, scoped, tag = 'input window, operand 3, single buffered']
    #allocation9 [shape = 'u8[8192]{0}', space=vmem, size = 0x2000, scoped, tag = 'output window, operand 0, single buffered']
    %10 = vsyncpa [#allocation4], 0
    %11 = vsyncpa [#allocation7], 0
    %12 = vsyncpa [#allocation5], 0
    // Predicated region
    $region2: #{tpu_custom_call.1} parent=1 // pred_check
      _
    $region3: #{tpu_custom_call.1} parent=1 // pred_check_branch
      %14 = sbr.rel (0) target = $region5
    $region4: #{tpu_custom_call.1} parent=1 // pred_region
      %s16 = ssub.s32 128, 128
      %17 = vsyncadd [#allocation4], %s16
      %s18 = sshll.u32 [#allocation3], 4
      %s19 = int_to_ptr.vmem [resolvable:$true] %s18
      %24 = dma.hbm_to_vmem [thread:$0]  %s0, 128, %s19, [#allocation4], 64, 64, 4
    $region5: #{tpu_custom_call.1} parent=1 // pred_fallthru
      _
    // Predicated region
    $region6: #{tpu_custom_call.1} parent=1 // pred_check
      _
    $region7: #{tpu_custom_call.1} parent=1 // pred_check_branch
      %26 = sbr.rel (0) target = $region9
    $region8: #{tpu_custom_call.1} parent=1 // pred_region
      %s28 = ssub.s32 1024, 1024
      %29 = vsyncadd [#allocation7], %s28
      %s30 = sshll.u32 [#allocation6], 4
      %s31 = int_to_ptr.vmem [resolvable:$true] %s30
      %36 = dma.hbm_to_vmem [thread:$0]  %s1, 1024, %s31, [#allocation7], 64, 64, 4
    $region9: #{tpu_custom_call.1} parent=1 // pred_fallthru
      _
    // Predicated region
    $region10: #{tpu_custom_call.1} parent=1 // pred_check
      _
    $region11: #{tpu_custom_call.1} parent=1 // pred_check_branch
      %38 = sbr.rel (0) target = $region13
    $region12: #{tpu_custom_call.1} parent=1 // pred_region
      _
    $region13: #{tpu_custom_call.1} parent=1 // pred_fallthru
      _
    // Predicated region
    $region14: #{tpu_custom_call.1} parent=1 // pred_check
      _
    $region15: #{tpu_custom_call.1} parent=1 // pred_check_branch
      %40 = sbr.rel (0) target = $region17
    $region16: #{tpu_custom_call.1} parent=1 // pred_region
      %s42 = ssub.s32 1024, 1024
      %43 = vsyncadd [#allocation7], %s42
      %s44 = sshll.u32 [#allocation8], 4
      %s45 = int_to_ptr.vmem [resolvable:$true] %s44
      %50 = dma.hbm_to_vmem [thread:$0]  %s3, 1024, %s45, [#allocation7], 64, 64, 4
    $region17: #{tpu_custom_call.1} parent=1 // pred_fallthru
      _
    // Predicated region
    $region18: #{tpu_custom_call.1} parent=1 // pred_check
      _
    $region19: #{tpu_custom_call.1} parent=1 // pred_check_branch
      %52 = sbr.rel (0) target = $region21
    $region20: #{tpu_custom_call.1} parent=1 // pred_region
      _
    $region21: #{tpu_custom_call.1} parent=1 // pred_fallthru
      _
    // Predicated region
    $region22: #{tpu_custom_call.1} parent=1 // pred_check
      _
    $region23: #{tpu_custom_call.1} parent=1 // pred_check_branch
      %54 = sbr.rel (0) target = $region25
    $region24: #{tpu_custom_call.1} parent=1 // pred_region
      %55 = dma.done [#allocation4], 128
    $region25: #{tpu_custom_call.1} parent=1 // pred_fallthru
      _
    // Predicated region
    $region26: #{tpu_custom_call.1} parent=1 // pred_check
      _
    $region27: #{tpu_custom_call.1} parent=1 // pred_check_branch
      %57 = sbr.rel (0) target = $region29
    $region28: #{tpu_custom_call.1} parent=1 // pred_region
      %58 = dma.done [#allocation7], 1024
    $region29: #{tpu_custom_call.1} parent=1 // pred_fallthru
      _
    // Predicated region
    $region30: #{tpu_custom_call.1} parent=1 // pred_check
      _
    $region31: #{tpu_custom_call.1} parent=1 // pred_check_branch
      %60 = sbr.rel (0) target = $region33
    $region32: #{tpu_custom_call.1} parent=1 // pred_region
      %61 = dma.done [#allocation7], 1024
    $region33: #{tpu_custom_call.1} parent=1 // pred_fallthru
      _
    %p63 = scmp.eq.s32.totalorder 0, 0
    // Predicated region
    $region34: #{tpu_custom_call.1} parent=1 // pred_check
      %p64 = pneg %p63
    $region35: #{tpu_custom_call.1} parent=1 // pred_check_branch
      %66 = sbr.rel (%p64) target = $region37
    $region36: #{tpu_custom_call.1} parent=1 // pred_region
      %67 = vst [vmem:[#allocation2] sm:$0xff] 0.0
      %68 = vst [vmem:[#allocation2 + $0x8] sm:$0xff] 0.0
    $region37: #{tpu_custom_call.1} parent=1 // pred_fallthru
      _
    %v69 = vld [vmem:[#allocation2] sm:$0xff]
    %v70 = vld [vmem:[#allocation2 + $0x8] sm:$0xff]
    %v71 = vld [vmem:[#allocation3] sm:$0xf]
    %v72 = vld [vmem:[#allocation3 + $0x4] sm:$0xf]
    %v73 = vld [vmem:[#allocation6] sm:$0xf]
    %v74 = vld [vmem:[#allocation6 + $0x4] sm:$0xf]
    %v75 = vld [vmem:[#allocation6 + $0x8] sm:$0xf]
    %v76 = vld [vmem:[#allocation6 + $0xc] sm:$0xf]
    %v77 = vld [vmem:[#allocation6 + $0x10] sm:$0xf]
    %v78 = vld [vmem:[#allocation6 + $0x14] sm:$0xf]
    %v79 = vld [vmem:[#allocation6 + $0x18] sm:$0xf]
    %v80 = vld [vmem:[#allocation6 + $0x1c] sm:$0xf]
    %v81 = vld [vmem:[#allocation6 + $0x20] sm:$0xf]
    %v82 = vld [vmem:[#allocation6 + $0x24] sm:$0xf]
    %v83 = vld [vmem:[#allocation6 + $0x28] sm:$0xf]
    %v84 = vld [vmem:[#allocation6 + $0x2c] sm:$0xf]
    %v85 = vld [vmem:[#allocation6 + $0x30] sm:$0xf]
    %v86 = vld [vmem:[#allocation6 + $0x34] sm:$0xf]
    %v87 = vld [vmem:[#allocation6 + $0x38] sm:$0xf]
    %v88 = vld [vmem:[#allocation6 + $0x3c] sm:$0xf]
    %v91 = vunpack.c.l.b16 %v71
    %v92 = vunpack.c.l.b16 %v72
    %v93 = vpack.c.b16 %v92, %v91
    %v111 = vunpack.c.l.b16 %v73
    %v112 = vunpack.c.l.b16 %v74
    %v113 = vunpack.c.l.b16 %v75
    %v114 = vunpack.c.l.b16 %v76
    %v115 = vunpack.c.l.b16 %v77
    %v116 = vunpack.c.l.b16 %v78
    %v117 = vunpack.c.l.b16 %v79
    %v118 = vunpack.c.l.b16 %v80
    %v119 = vunpack.c.l.b16 %v81
    %v120 = vunpack.c.l.b16 %v82
    %v121 = vunpack.c.l.b16 %v83
    %v122 = vunpack.c.l.b16 %v84
    %v123 = vunpack.c.l.b16 %v85
    %v124 = vunpack.c.l.b16 %v86
    %v125 = vunpack.c.l.b16 %v87
    %v126 = vunpack.c.l.b16 %v88
    %v127 = vpack.c.b16 %v112, %v111
    %v128 = vpack.c.b16 %v114, %v113
    %v129 = vpack.c.b16 %v116, %v115
    %v130 = vpack.c.b16 %v118, %v117
    %v131 = vpack.c.b16 %v120, %v119
    %v132 = vpack.c.b16 %v122, %v121
    %v133 = vpack.c.b16 %v124, %v123
    %v134 = vpack.c.b16 %v126, %v125
    %143 = vmatprep.subr.bf16.mxu0 0
    %144 = vmatpush1.bf16.msra.mxu0 %v127
    %145 = vmatprep.subr.bf16.mxu0 0
    %146 = vmatpush1.bf16.msra.mxu0 %v128
    %147 = vmatprep.subr.bf16.mxu0 0
    %148 = vmatpush1.bf16.msra.mxu0 %v129
    %149 = vmatprep.subr.bf16.mxu0 0
    %150 = vmatpush1.bf16.msra.mxu0 %v130
    %151 = vmatprep.subr.bf16.mxu0 0
    %152 = vmatpush1.bf16.msra.mxu0 %v131
    %153 = vmatprep.subr.bf16.mxu0 0
    %154 = vmatpush1.bf16.msra.mxu0 %v132
    %155 = vmatprep.subr.bf16.mxu0 0
    %156 = vmatpush1.bf16.msra.mxu0 %v133
    %157 = vmatprep.subr.bf16.mxu0 0
    %158 = vmatpush1.bf16.msra.mxu0 %v134
    %159 = vmatprep.subr.bf16.mxu0 0
    %160 = vmatpush1.bf16.msra.mxu0 0
    %161 = vmatprep.subr.bf16.mxu0 0
    %162 = vmatpush1.bf16.msra.mxu0 0
    %163 = vmatprep.subr.bf16.mxu0 0
    %164 = vmatpush1.bf16.msra.mxu0 0
    %165 = vmatprep.subr.bf16.mxu0 0
    %166 = vmatpush1.bf16.msra.mxu0 0
    %167 = vmatprep.subr.bf16.mxu0 0
    %168 = vmatpush1.bf16.msra.mxu0 0
    %169 = vmatprep.subr.bf16.mxu0 0
    %170 = vmatpush1.bf16.msra.mxu0 0
    %171 = vmatprep.subr.bf16.mxu0 0
    %172 = vmatpush1.bf16.msra.mxu0 0
    %173 = vmatprep.subr.bf16.mxu0 0
    %174 = vmatpush1.bf16.msra.mxu0 0
    %175 = vmatprep.mubr.bf16.mxu0 0
    %176 = vmatmul.mubr.bf16.gmra.mrb[0].mxu0 %v93
    %v177 = vpop.f32.mrb[0].mxu0
    %v178 = vadd.f32 0.0, %v177
    %v179 = vpop.f32.mrb[0].mxu0
    %v180 = vpop.f32.mrb[0].mxu0
    %v181 = vadd.f32 0.0, %v180
    %v182 = vpop.f32.mrb[0].mxu0
    %183 = vdwg.mxu0
    %v184 = vadd.f32 %v69, %v178
    %v185 = vadd.f32 %v70, %v181
    %186 = vst [vmem:[#allocation2] sm:$0xff] %v184
    %187 = vst [vmem:[#allocation2 + $0x8] sm:$0xff] %v185
    // Predicated region
    $region38: #{tpu_custom_call.1} parent=1 // pred_check
      %p188 = pneg %p63
    $region39: #{tpu_custom_call.1} parent=1 // pred_check_branch
      %190 = sbr.rel (%p188) target = $region41
    $region40: #{tpu_custom_call.1} parent=1 // pred_region
      %v191 = vld [vmem:[#allocation2] sm:$0xff]
      %v192 = vld [vmem:[#allocation2 + $0x8] sm:$0xff]
      %v193 = vld [vmem:[%s2] sm:$0x1]
      %v195 = vlaneseq
      %v196 = vshrl.u32 %v195, 7
      %v197 = vsub.s32 0, %v196
      %v198 = vrot.slane %v193, %v197
      %v200 = vadd.f32 %v191, %v198
      %v201 = vadd.f32 %v192, %v198
      %v202 = vmax.f32 %v200, 0.0
      %v203 = vmax.f32 %v201, 0.0
      %v204 = vpack.c.bf16 %v203, %v202
      %v205 = vld [vmem:[#allocation8] sm:$0xf]
      %v206 = vld [vmem:[#allocation8 + $0x4] sm:$0xf]
      %v207 = vld [vmem:[#allocation8 + $0x8] sm:$0xf]
      %v208 = vld [vmem:[#allocation8 + $0xc] sm:$0xf]
      %v209 = vld [vmem:[#allocation8 + $0x10] sm:$0xf]
      %v210 = vld [vmem:[#allocation8 + $0x14] sm:$0xf]
      %v211 = vld [vmem:[#allocation8 + $0x18] sm:$0xf]
      %v212 = vld [vmem:[#allocation8 + $0x1c] sm:$0xf]
      %v213 = vld [vmem:[#allocation8 + $0x20] sm:$0xf]
      %v214 = vld [vmem:[#allocation8 + $0x24] sm:$0xf]
      %v215 = vld [vmem:[#allocation8 + $0x28] sm:$0xf]
      %v216 = vld [vmem:[#allocation8 + $0x2c] sm:$0xf]
      %v217 = vld [vmem:[#allocation8 + $0x30] sm:$0xf]
      %v218 = vld [vmem:[#allocation8 + $0x34] sm:$0xf]
      %v219 = vld [vmem:[#allocation8 + $0x38] sm:$0xf]
      %v220 = vld [vmem:[#allocation8 + $0x3c] sm:$0xf]
      %v221 = vld [vmem:[%s4] sm:$0x1]
      %v223 = vlaneseq
      %v224 = vshrl.u32 %v223, 7
      %v225 = vsub.s32 0, %v224
      %v226 = vrot.slane %v221, %v225
      %v244 = vunpack.c.l.b16 %v205
      %v245 = vunpack.c.l.b16 %v206
      %v246 = vunpack.c.l.b16 %v207
      %v247 = vunpack.c.l.b16 %v208
      %v248 = vunpack.c.l.b16 %v209
      %v249 = vunpack.c.l.b16 %v210
      %v250 = vunpack.c.l.b16 %v211
      %v251 = vunpack.c.l.b16 %v212
      %v252 = vunpack.c.l.b16 %v213
      %v253 = vunpack.c.l.b16 %v214
      %v254 = vunpack.c.l.b16 %v215
      %v255 = vunpack.c.l.b16 %v216
      %v256 = vunpack.c.l.b16 %v217
      %v257 = vunpack.c.l.b16 %v218
      %v258 = vunpack.c.l.b16 %v219
      %v259 = vunpack.c.l.b16 %v220
      %v260 = vpack.c.b16 %v245, %v244
      %v261 = vpack.c.b16 %v247, %v246
      %v262 = vpack.c.b16 %v249, %v248
      %v263 = vpack.c.b16 %v251, %v250
      %v264 = vpack.c.b16 %v253, %v252
      %v265 = vpack.c.b16 %v255, %v254
      %v266 = vpack.c.b16 %v257, %v256
      %v267 = vpack.c.b16 %v259, %v258
      %276 = vmatprep.subr.bf16.mxu0 0
      %277 = vmatpush1.bf16.msra.mxu0 %v260
      %278 = vmatprep.subr.bf16.mxu0 0
      %279 = vmatpush1.bf16.msra.mxu0 %v261
      %280 = vmatprep.subr.bf16.mxu0 0
      %281 = vmatpush1.bf16.msra.mxu0 %v262
      %282 = vmatprep.subr.bf16.mxu0 0
      %283 = vmatpush1.bf16.msra.mxu0 %v263
      %284 = vmatprep.subr.bf16.mxu0 0
      %285 = vmatpush1.bf16.msra.mxu0 %v264
      %286 = vmatprep.subr.bf16.mxu0 0
      %287 = vmatpush1.bf16.msra.mxu0 %v265
      %288 = vmatprep.subr.bf16.mxu0 0
      %289 = vmatpush1.bf16.msra.mxu0 %v266
      %290 = vmatprep.subr.bf16.mxu0 0
      %291 = vmatpush1.bf16.msra.mxu0 %v267
      %292 = vmatprep.subr.bf16.mxu0 0
      %293 = vmatpush1.bf16.msra.mxu0 0
      %294 = vmatprep.subr.bf16.mxu0 0
      %295 = vmatpush1.bf16.msra.mxu0 0
      %296 = vmatprep.subr.bf16.mxu0 0
      %297 = vmatpush1.bf16.msra.mxu0 0
      %298 = vmatprep.subr.bf16.mxu0 0
      %299 = vmatpush1.bf16.msra.mxu0 0
      %300 = vmatprep.subr.bf16.mxu0 0
      %301 = vmatpush1.bf16.msra.mxu0 0
      %302 = vmatprep.subr.bf16.mxu0 0
      %303 = vmatpush1.bf16.msra.mxu0 0
      %304 = vmatprep.subr.bf16.mxu0 0
      %305 = vmatpush1.bf16.msra.mxu0 0
      %306 = vmatprep.subr.bf16.mxu0 0
      %307 = vmatpush1.bf16.msra.mxu0 0
      %308 = vmatprep.mubr.bf16.mxu0 0
      %309 = vmatmul.mubr.bf16.gmra.mrb[0].mxu0 %v204
      %v310 = vpop.f32.mrb[0].mxu0
      %v311 = vadd.f32 %v226, %v310
      %v312 = vpop.f32.mrb[0].mxu0
      %v313 = vpop.f32.mrb[0].mxu0
      %v314 = vadd.f32 %v226, %v313
      %v315 = vpop.f32.mrb[0].mxu0
      %316 = vdwg.mxu0
      %v317 = vlaneseq
      %v318 = vand.u32 %v317, 127
      %vm319 = vcmp.ge.s32.totalorder %v318, 15
      %v320 = vsel %vm319, -inf, %v311
      %v321 = vsel %vm319, -inf, %v314
      %322 = vmax.xlane.f32.xlu0 %v320
      %v323 = vpop.xlane.xlu0 %322
      %324 = vmax.xlane.f32.xlu0 %v321
      %v325 = vpop.xlane.xlu0 %324
      %v326 = vsub.f32 %v320, %v323
      %v327 = vsub.f32 %v321, %v325
      %v328 = vmul.f32 %v326, 1.442695
      %v329 = vpow.pop %v328
      %v330 = vmul.f32 %v327, 1.442695
      %v331 = vpow.pop %v330
      %332 = vadd.xlane.f32.xlu0 %v329
      %v333 = vpop.xlane.xlu0 %332
      %334 = vadd.xlane.f32.xlu0 %v331
      %v335 = vpop.xlane.xlu0 %334
      %v336 = vrcp.pop %v333
      %v337 = vrcp.pop %v335
      %v338 = vmul.f32 %v329, %v336
      %v339 = vmul.f32 %v331, %v337
      %340 = vst [vmem:[#allocation9] sm:$0xff] %v338
      %341 = vst [vmem:[#allocation9 + $0x8] sm:$0xff] %v339
    $region41: #{tpu_custom_call.1} parent=1 // pred_fallthru
      _
    // Predicated region
    $region42: #{tpu_custom_call.1} parent=1 // pred_check
      _
    $region43: #{tpu_custom_call.1} parent=1 // pred_check_branch
      %343 = sbr.rel (0) target = $region45
    $region44: #{tpu_custom_call.1} parent=1 // pred_region
      %s345 = ssub.s32 256, 256
      %346 = vsyncadd [#allocation5], %s345
      %s347 = sshll.u32 [#allocation9], 4
      %s348 = int_to_ptr.vmem [resolvable:$true] %s347
      %353 = dma.vmem_to_hbm [thread:$0]  %s348, 256, %s5, [#allocation5], 128, 128, 8
    $region45: #{tpu_custom_call.1} parent=1 // pred_fallthru
      _
    // Predicated region
    $region46: #{tpu_custom_call.1} parent=1 // pred_check
      _
    $region47: #{tpu_custom_call.1} parent=1 // pred_check_branch
      %355 = sbr.rel (0) target = $region49
    $region48: #{tpu_custom_call.1} parent=1 // pred_region
      %356 = dma.done [#allocation5], 256
    $region49: #{tpu_custom_call.1} parent=1 // pred_fallthru
      _
    %357 = vsyncpa [#allocation4], 1
    %358 = vsyncpa [#allocation7], 1
    %359 = vsyncpa [#allocation5], 1

// kernel: tpu_custom_call.1
$region0: #{tpu_custom_call.1}
  #allocation0 [shape = 'u32[]', space=smem, size = 0x4, offset = 0x4, fixed_abs, tag = 'smem constant byte address 0x4 - core index']
  #allocation1 [shape = 'u32[144,128]{1,0:T(1,128)}', space=vmem, size = 0x12000, scoped, tag = 'internal scratch']
  #allocation2 [shape = 'f32[16,128]{1,0:T(8,128)}', space=vmem, size = 0x2000, scoped, tag = 'scratch operand']
  %s0 = inlined_call_operand.hbm [shape: bf16[16,128], index: 0, kind: input, shape index: {}]
  %s1 = inlined_call_operand.hbm [shape: bf16[128,128], index: 1, kind: input, shape index: {}]
  %s2 = inlined_call_operand.vmem [shape: f32[1,128], index: 2, kind: input, shape index: {}]
  %s3 = inlined_call_operand.hbm [shape: bf16[128,128], index: 3, kind: input, shape index: {}]
  %s4 = inlined_call_operand.vmem [shape: f32[1,128], index: 4, kind: input, shape index: {}]
  %s5 = inlined_call_operand.hbm [shape: f32[16,128], index: 5, kind: output, shape index: {}]
  %s6 = sld [smem:[#allocation0]]
  $region50: #{tpu_custom_call.1} parent=0
    _
  %s8 = ssub.s32 1, %s6
  %s9 = scalar_select 0, %s8, %s6
  $region1: #{tpu_custom_call.1} parent=0
    #allocation3 [shape = 'u8[4096]{0}', space=vmem, size = 0x1000, scoped, tag = 'input window, operand 0, single buffered']
    #allocation4 [shape = 's32[1]{0}', space=sflag, size = 0x4, scoped, tag = 'scoped memory for tpu_custom_call.1']
    #allocation5 [shape = 's32[1]{0}', space=sflag, size = 0x4, scoped, tag = 'scoped memory for tpu_custom_call.1']
    #allocation6 [shape = 'u8[32768]{0}', space=vmem, size = 0x8000, scoped, tag = 'input window, operand 1, single buffered']
    #allocation7 [shape = 's32[1]{0}', space=sflag, size = 0x4, scoped, tag = 'scoped memory for tpu_custom_call.1']
    #allocation8 [shape = 'u8[32768]{0}', space=vmem, size = 0x8000, scoped, tag = 'input window, operand 3, single buffered']
    #allocation9 [shape = 'u8[8192]{0}', space=vmem, size = 0x2000, scoped, tag = 'output window, operand 0, single buffered']
    %10 = vsyncpa [#allocation4], 0
    %11 = vsyncpa [#allocation7], 0
    %12 = vsyncpa [#allocation5], 0
    // Predicated region
    $region2: #{tpu_custom_call.1} parent=1 // pred_check
      _
    $region3: #{tpu_custom_call.1} parent=1 // pred_check_branch
      %14 = sbr.rel (0) target = $region5
    $region4: #{tpu_custom_call.1} parent=1 // pred_region
      %s16 = ssub.s32 128, 128
      %17 = vsyncadd [#allocation4], %s16
      %s18 = sshll.u32 [#allocation3], 4
      %s19 = int_to_ptr.vmem [resolvable:$true] %s18
      %24 = dma.hbm_to_vmem [thread:$0]  %s0, 128, %s19, [#allocation4], 64, 64, 4
    $region5: #{tpu_custom_call.1} parent=1 // pred_fallthru
      _
    // Predicated region
    $region6: #{tpu_custom_call.1} parent=1 // pred_check
      _
    $region7: #{tpu_custom_call.1} parent=1 // pred_check_branch
      %26 = sbr.rel (0) target = $region9
    $region8: #{tpu_custom_call.1} parent=1 // pred_region
      %s28 = ssub.s32 1024, 1024
      %29 = vsyncadd [#allocation7], %s28
      %s30 = sshll.u32 [#allocation6], 4
      %s31 = int_to_ptr.vmem [resolvable:$true] %s30
      %36 = dma.hbm_to_vmem [thread:$0]  %s1, 1024, %s31, [#allocation7], 64, 64, 4
    $region9: #{tpu_custom_call.1} parent=1 // pred_fallthru
      _
    // Predicated region
    $region10: #{tpu_custom_call.1} parent=1 // pred_check
      _
    $region11: #{tpu_custom_call.1} parent=1 // pred_check_branch
      %38 = sbr.rel (0) target = $region13
    $region12: #{tpu_custom_call.1} parent=1 // pred_region
      _
    $region13: #{tpu_custom_call.1} parent=1 // pred_fallthru
      _
    // Predicated region
    $region14: #{tpu_custom_call.1} parent=1 // pred_check
      _
    $region15: #{tpu_custom_call.1} parent=1 // pred_check_branch
      %40 = sbr.rel (0) target = $region17
    $region16: #{tpu_custom_call.1} parent=1 // pred_region
      %s42 = ssub.s32 1024, 1024
      %43 = vsyncadd [#allocation7], %s42
      %s44 = sshll.u32 [#allocation8], 4
      %s45 = int_to_ptr.vmem [resolvable:$true] %s44
      %50 = dma.hbm_to_vmem [thread:$0]  %s3, 1024, %s45, [#allocation7], 64, 64, 4
    $region17: #{tpu_custom_call.1} parent=1 // pred_fallthru
      _
    // Predicated region
    $region18: #{tpu_custom_call.1} parent=1 // pred_check
      _
    $region19: #{tpu_custom_call.1} parent=1 // pred_check_branch
      %52 = sbr.rel (0) target = $region21
    $region20: #{tpu_custom_call.1} parent=1 // pred_region
      _
    $region21: #{tpu_custom_call.1} parent=1 // pred_fallthru
      _
    // Predicated region
    $region22: #{tpu_custom_call.1} parent=1 // pred_check
      _
    $region23: #{tpu_custom_call.1} parent=1 // pred_check_branch
      %54 = sbr.rel (0) target = $region25
    $region24: #{tpu_custom_call.1} parent=1 // pred_region
      %55 = dma.done [#allocation4], 128
    $region25: #{tpu_custom_call.1} parent=1 // pred_fallthru
      _
    // Predicated region
    $region26: #{tpu_custom_call.1} parent=1 // pred_check
      _
    $region27: #{tpu_custom_call.1} parent=1 // pred_check_branch
      %57 = sbr.rel (0) target = $region29
    $region28: #{tpu_custom_call.1} parent=1 // pred_region
      %58 = dma.done [#allocation7], 1024
    $region29: #{tpu_custom_call.1} parent=1 // pred_fallthru
      _
    // Predicated region
    $region30: #{tpu_custom_call.1} parent=1 // pred_check
      _
    $region31: #{tpu_custom_call.1} parent=1 // pred_check_branch
      %60 = sbr.rel (0) target = $region33
    $region32: #{tpu_custom_call.1} parent=1 // pred_region
      %61 = dma.done [#allocation7], 1024
    $region33: #{tpu_custom_call.1} parent=1 // pred_fallthru
      _
    %p63 = scmp.eq.s32.totalorder 0, 0
    // Predicated region
    $region34: #{tpu_custom_call.1} parent=1 // pred_check
      %p64 = pneg %p63
    $region35: #{tpu_custom_call.1} parent=1 // pred_check_branch
      %66 = sbr.rel (%p64) target = $region37
    $region36: #{tpu_custom_call.1} parent=1 // pred_region
      %67 = vst [vmem:[#allocation2] sm:$0xff] 0.0
      %68 = vst [vmem:[#allocation2 + $0x8] sm:$0xff] 0.0
    $region37: #{tpu_custom_call.1} parent=1 // pred_fallthru
      _
    %v69 = vld [vmem:[#allocation2] sm:$0xff]
    %v70 = vld [vmem:[#allocation2 + $0x8] sm:$0xff]
    %v71 = vld [vmem:[#allocation3] sm:$0xf]
    %v72 = vld [vmem:[#allocation3 + $0x4] sm:$0xf]
    %v73 = vld [vmem:[#allocation6] sm:$0xf]
    %v74 = vld [vmem:[#allocation6 + $0x4] sm:$0xf]
    %v75 = vld [vmem:[#allocation6 + $0x8] sm:$0xf]
    %v76 = vld [vmem:[#allocation6 + $0xc] sm:$0xf]
    %v77 = vld [vmem:[#allocation6 + $0x10] sm:$0xf]
    %v78 = vld [vmem:[#allocation6 + $0x14] sm:$0xf]
    %v79 = vld [vmem:[#allocation6 + $0x18] sm:$0xf]
    %v80 = vld [vmem:[#allocation6 + $0x1c] sm:$0xf]
    %v81 = vld [vmem:[#allocation6 + $0x20] sm:$0xf]
    %v82 = vld [vmem:[#allocation6 + $0x24] sm:$0xf]
    %v83 = vld [vmem:[#allocation6 + $0x28] sm:$0xf]
    %v84 = vld [vmem:[#allocation6 + $0x2c] sm:$0xf]
    %v85 = vld [vmem:[#allocation6 + $0x30] sm:$0xf]
    %v86 = vld [vmem:[#allocation6 + $0x34] sm:$0xf]
    %v87 = vld [vmem:[#allocation6 + $0x38] sm:$0xf]
    %v88 = vld [vmem:[#allocation6 + $0x3c] sm:$0xf]
    %v91 = vunpack.c.l.b16 %v71
    %v92 = vunpack.c.l.b16 %v72
    %v93 = vpack.c.b16 %v92, %v91
    %v111 = vunpack.c.l.b16 %v73
    %v112 = vunpack.c.l.b16 %v74
    %v113 = vunpack.c.l.b16 %v75
    %v114 = vunpack.c.l.b16 %v76
    %v115 = vunpack.c.l.b16 %v77
    %v116 = vunpack.c.l.b16 %v78
    %v117 = vunpack.c.l.b16 %v79
    %v118 = vunpack.c.l.b16 %v80
    %v119 = vunpack.c.l.b16 %v81
    %v120 = vunpack.c.l.b16 %v82
    %v121 = vunpack.c.l.b16 %v83
    %v122 = vunpack.c.l.b16 %v84
    %v123 = vunpack.c.l.b16 %v85
    %v124 = vunpack.c.l.b16 %v86
    %v125 = vunpack.c.l.b16 %v87
    %v126 = vunpack.c.l.b16 %v88
    %v127 = vpack.c.b16 %v112, %v111
    %v128 = vpack.c.b16 %v114, %v113
    %v129 = vpack.c.b16 %v116, %v115
    %v130 = vpack.c.b16 %v118, %v117
    %v131 = vpack.c.b16 %v120, %v119
    %v132 = vpack.c.b16 %v122, %v121
    %v133 = vpack.c.b16 %v124, %v123
    %v134 = vpack.c.b16 %v126, %v125
    %143 = vmatprep.subr.bf16.mxu0 0
    %144 = vmatpush1.bf16.msra.mxu0 %v127
    %145 = vmatprep.subr.bf16.mxu0 0
    %146 = vmatpush1.bf16.msra.mxu0 %v128
    %147 = vmatprep.subr.bf16.mxu0 0
    %148 = vmatpush1.bf16.msra.mxu0 %v129
    %149 = vmatprep.subr.bf16.mxu0 0
    %150 = vmatpush1.bf16.msra.mxu0 %v130
    %151 = vmatprep.subr.bf16.mxu0 0
    %152 = vmatpush1.bf16.msra.mxu0 %v131
    %153 = vmatprep.subr.bf16.mxu0 0
    %154 = vmatpush1.bf16.msra.mxu0 %v132
    %155 = vmatprep.subr.bf16.mxu0 0
    %156 = vmatpush1.bf16.msra.mxu0 %v133
    %157 = vmatprep.subr.bf16.mxu0 0
    %158 = vmatpush1.bf16.msra.mxu0 %v134
    %159 = vmatprep.subr.bf16.mxu0 0
    %160 = vmatpush1.bf16.msra.mxu0 0
    %161 = vmatprep.subr.bf16.mxu0 0
    %162 = vmatpush1.bf16.msra.mxu0 0
    %163 = vmatprep.subr.bf16.mxu0 0
    %164 = vmatpush1.bf16.msra.mxu0 0
    %165 = vmatprep.subr.bf16.mxu0 0
    %166 = vmatpush1.bf16.msra.mxu0 0
    %167 = vmatprep.subr.bf16.mxu0 0
    %168 = vmatpush1.bf16.msra.mxu0 0
    %169 = vmatprep.subr.bf16.mxu0 0
    %170 = vmatpush1.bf16.msra.mxu0 0
    %171 = vmatprep.subr.bf16.mxu0 0
    %172 = vmatpush1.bf16.msra.mxu0 0
    %173 = vmatprep.subr.bf16.mxu0 0
    %174 = vmatpush1.bf16.msra.mxu0 0
    %175 = vmatprep.mubr.bf16.mxu0 0
    %176 = vmatmul.mubr.bf16.gmra.mrb[0].mxu0 %v93
    %v177 = vpop.f32.mrb[0].mxu0
    %v178 = vadd.f32 0.0, %v177
    %v179 = vpop.f32.mrb[0].mxu0
    %v180 = vpop.f32.mrb[0].mxu0
    %v181 = vadd.f32 0.0, %v180
    %v182 = vpop.f32.mrb[0].mxu0
    %183 = vdwg.mxu0
    %v184 = vadd.f32 %v69, %v178
    %v185 = vadd.f32 %v70, %v181
    %186 = vst [vmem:[#allocation2] sm:$0xff] %v184
    %187 = vst [vmem:[#allocation2 + $0x8] sm:$0xff] %v185
    // Predicated region
    $region38: #{tpu_custom_call.1} parent=1 // pred_check
      %p188 = pneg %p63
    $region39: #{tpu_custom_call.1} parent=1 // pred_check_branch
      %190 = sbr.rel (%p188) target = $region41
    $region40: #{tpu_custom_call.1} parent=1 // pred_region
      %v191 = vld [vmem:[#allocation2] sm:$0xff]
      %v192 = vld [vmem:[#allocation2 + $0x8] sm:$0xff]
      %v193 = vld [vmem:[%s2] sm:$0x1]
      %v195 = vlaneseq
      %v196 = vshrl.u32 %v195, 7
      %v197 = vsub.s32 0, %v196
      %v198 = vrot.slane %v193, %v197
      %v200 = vadd.f32 %v191, %v198
      %v201 = vadd.f32 %v192, %v198
      %v202 = vmax.f32 %v200, 0.0
      %v203 = vmax.f32 %v201, 0.0
      %v204 = vpack.c.bf16 %v203, %v202
      %v205 = vld [vmem:[#allocation8] sm:$0xf]
      %v206 = vld [vmem:[#allocation8 + $0x4] sm:$0xf]
      %v207 = vld [vmem:[#allocation8 + $0x8] sm:$0xf]
      %v208 = vld [vmem:[#allocation8 + $0xc] sm:$0xf]
      %v209 = vld [vmem:[#allocation8 + $0x10] sm:$0xf]
      %v210 = vld [vmem:[#allocation8 + $0x14] sm:$0xf]
      %v211 = vld [vmem:[#allocation8 + $0x18] sm:$0xf]
      %v212 = vld [vmem:[#allocation8 + $0x1c] sm:$0xf]
      %v213 = vld [vmem:[#allocation8 + $0x20] sm:$0xf]
      %v214 = vld [vmem:[#allocation8 + $0x24] sm:$0xf]
      %v215 = vld [vmem:[#allocation8 + $0x28] sm:$0xf]
      %v216 = vld [vmem:[#allocation8 + $0x2c] sm:$0xf]
      %v217 = vld [vmem:[#allocation8 + $0x30] sm:$0xf]
      %v218 = vld [vmem:[#allocation8 + $0x34] sm:$0xf]
      %v219 = vld [vmem:[#allocation8 + $0x38] sm:$0xf]
      %v220 = vld [vmem:[#allocation8 + $0x3c] sm:$0xf]
      %v221 = vld [vmem:[%s4] sm:$0x1]
      %v223 = vlaneseq
      %v224 = vshrl.u32 %v223, 7
      %v225 = vsub.s32 0, %v224
      %v226 = vrot.slane %v221, %v225
      %v244 = vunpack.c.l.b16 %v205
      %v245 = vunpack.c.l.b16 %v206
      %v246 = vunpack.c.l.b16 %v207
      %v247 = vunpack.c.l.b16 %v208
      %v248 = vunpack.c.l.b16 %v209
      %v249 = vunpack.c.l.b16 %v210
      %v250 = vunpack.c.l.b16 %v211
      %v251 = vunpack.c.l.b16 %v212
      %v252 = vunpack.c.l.b16 %v213
      %v253 = vunpack.c.l.b16 %v214
      %v254 = vunpack.c.l.b16 %v215
      %v255 = vunpack.c.l.b16 %v216
      %v256 = vunpack.c.l.b16 %v217
      %v257 = vunpack.c.l.b16 %v218
      %v258 = vunpack.c.l.b16 %v219
      %v259 = vunpack.c.l.b16 %v220
      %v260 = vpack.c.b16 %v245, %v244
      %v261 = vpack.c.b16 %v247, %v246
      %v262 = vpack.c.b16 %v249, %v248
      %v263 = vpack.c.b16 %v251, %v250
      %v264 = vpack.c.b16 %v253, %v252
      %v265 = vpack.c.b16 %v255, %v254
      %v266 = vpack.c.b16 %v257, %v256
      %v267 = vpack.c.b16 %v259, %v258
      %276 = vmatprep.subr.bf16.mxu0 0
      %277 = vmatpush1.bf16.msra.mxu0 %v260
      %278 = vmatprep.subr.bf16.mxu0 0
      %279 = vmatpush1.bf16.msra.mxu0 %v261
      %280 = vmatprep.subr.bf16.mxu0 0
      %281 = vmatpush1.bf16.msra.mxu0 %v262
      %282 = vmatprep.subr.bf16.mxu0 0
      %283 = vmatpush1.bf16.msra.mxu0 %v263
      %284 = vmatprep.subr.bf16.mxu0 0
      %285 = vmatpush1.bf16.msra.mxu0 %v264
      %286 = vmatprep.subr.bf16.mxu0 0
      %287 = vmatpush1.bf16.msra.mxu0 %v265
      %288 = vmatprep.subr.bf16.mxu0 0
      %289 = vmatpush1.bf16.msra.mxu0 %v266
      %290 = vmatprep.subr.bf16.mxu0 0
      %291 = vmatpush1.bf16.msra.mxu0 %v267
      %292 = vmatprep.subr.bf16.mxu0 0
      %293 = vmatpush1.bf16.msra.mxu0 0
      %294 = vmatprep.subr.bf16.mxu0 0
      %295 = vmatpush1.bf16.msra.mxu0 0
      %296 = vmatprep.subr.bf16.mxu0 0
      %297 = vmatpush1.bf16.msra.mxu0 0
      %298 = vmatprep.subr.bf16.mxu0 0
      %299 = vmatpush1.bf16.msra.mxu0 0
      %300 = vmatprep.subr.bf16.mxu0 0
      %301 = vmatpush1.bf16.msra.mxu0 0
      %302 = vmatprep.subr.bf16.mxu0 0
      %303 = vmatpush1.bf16.msra.mxu0 0
      %304 = vmatprep.subr.bf16.mxu0 0
      %305 = vmatpush1.bf16.msra.mxu0 0
      %306 = vmatprep.subr.bf16.mxu0 0
      %307 = vmatpush1.bf16.msra.mxu0 0
      %308 = vmatprep.mubr.bf16.mxu0 0
      %309 = vmatmul.mubr.bf16.gmra.mrb[0].mxu0 %v204
      %v310 = vpop.f32.mrb[0].mxu0
      %v311 = vadd.f32 %v226, %v310
      %v312 = vpop.f32.mrb[0].mxu0
      %v313 = vpop.f32.mrb[0].mxu0
      %v314 = vadd.f32 %v226, %v313
      %v315 = vpop.f32.mrb[0].mxu0
      %316 = vdwg.mxu0
      %v317 = vlaneseq
      %v318 = vand.u32 %v317, 127
      %vm319 = vcmp.ge.s32.totalorder %v318, 15
      %v320 = vsel %vm319, -inf, %v311
      %v321 = vsel %vm319, -inf, %v314
      %322 = vmax.xlane.f32.xlu0 %v320
      %v323 = vpop.xlane.xlu0 %322
      %324 = vmax.xlane.f32.xlu0 %v321
      %v325 = vpop.xlane.xlu0 %324
      %v326 = vsub.f32 %v320, %v323
      %v327 = vsub.f32 %v321, %v325
      %v328 = vmul.f32 %v326, 1.442695
      %v329 = vpow.pop %v328
      %v330 = vmul.f32 %v327, 1.442695
      %v331 = vpow.pop %v330
      %332 = vadd.xlane.f32.xlu0 %v329
      %v333 = vpop.xlane.xlu0 %332
      %334 = vadd.xlane.f32.xlu0 %v331
      %v335 = vpop.xlane.xlu0 %334
      %v336 = vrcp.pop %v333
      %v337 = vrcp.pop %v335
      %v338 = vmul.f32 %v329, %v336
      %v339 = vmul.f32 %v331, %v337
      %340 = vst [vmem:[#allocation9] sm:$0xff] %v338
      %341 = vst [vmem:[#allocation9 + $0x8] sm:$0xff] %v339
    $region41: #{tpu_custom_call.1} parent=1 // pred_fallthru
      _
    // Predicated region
    $region42: #{tpu_custom_call.1} parent=1 // pred_check
      _
    $region43: #{tpu_custom_call.1} parent=1 // pred_check_branch
      %343 = sbr.rel (0) target = $region45
    $region44: #{tpu_custom_call.1} parent=1 // pred_region
      %s345 = ssub.s32 256, 256
      %346 = vsyncadd [#allocation5], %s345
      %s347 = sshll.u32 [#allocation9], 4
      %s348 = int_to_ptr.vmem [resolvable:$true] %s347
      %353 = dma.vmem_to_hbm [thread:$0]  %s348, 256, %s5, [#allocation5], 128, 128, 8
    $region45: #{tpu_custom_call.1} parent=1 // pred_fallthru
      _
    // Predicated region
    $region46: #{tpu_custom_call.1} parent=1 // pred_check
      _
    $region47: #{tpu_custom_call.1} parent=1 // pred_check_branch
      %355 = sbr.rel (0) target = $region49
    $region48: #{tpu_custom_call.1} parent=1 // pred_region
      %356 = dma.done [#allocation5], 256
    $region49: #{tpu_custom_call.1} parent=1 // pred_fallthru
      _
    %357 = vsyncpa [#allocation4], 1
    %358 = vsyncpa [#allocation7], 1
    %359 = vsyncpa [#allocation5], 1

</llo_original>
